<compile_context>
chip_gen: v6e
topology: v6e:2x2x1
jax: 0.10.0
libtpu: 0.0.40
codegen_flags: <defaults>
</compile_context>

<pallas_src>
import functools

import jax
import jax.numpy as jnp
import numpy as np
from jax import lax
from jax.experimental import pallas as pl
from jax.experimental.pallas import tpu as pltpu

# ------------- fixed sizes hard-coded in multihead_net.__init__ ---------------
PENUL = 1024      # linear1 out / linear3 out ("penul")
MEMORY = 2048     # linear2 out / GRU hidden ("memory_size")

HEAD_PAD = 128    # lane-dense padding for the tiny primary-head output dim


# =========================== tiled linear (+ReLU) ==============================
# M = B*T is small (16 at test shapes) so the whole layer is weight streaming:
# take the full reduction dim K in one block and tile only N with large blocks
# (>= 2 blocks so megacore can split the weight stream across TensorCores).
def _linear_kernel(x_ref, w_ref, b_ref, o_ref, *, relu):
    out = jnp.dot(x_ref[...], w_ref[...],
                  preferred_element_type=jnp.float32) + b_ref[...]
    if relu:
        out = jnp.maximum(out, 0.0)
    o_ref[...] = out.astype(o_ref.dtype)


def _pick_tn(n):
    # Largest tile <= 2048 that divides N while keeping >= 2 blocks along N
    # (megacore).  Falls back to the full dim.
    for tn in (2048, 1024, 512, 256, 128):
        if n % tn == 0 and n // tn >= 2:
            return tn
    return n


def linear_pallas(x2d, w_t, b, *, relu):
    """x2d: (M, K), w_t: (K, N) (transposed torch weight), b: (N,) -> (M, N)."""
    M, K = x2d.shape
    K2, N = w_t.shape
    assert K == K2
    # NOTE: full-M / full-K blocks assume B*T stays small (it is 16 here);
    # tile M/K before scaling batch or sequence length.
    tn = _pick_tn(N)
    kernel = functools.partial(_linear_kernel, relu=relu)
    return pl.pallas_call(
        kernel,
        out_shape=jax.ShapeDtypeStruct((M, N), jnp.float32),
        grid_spec=pltpu.PrefetchScalarGridSpec(
            num_scalar_prefetch=0,
            grid=(N // tn,),
            in_specs=[
                pl.BlockSpec((M, K), lambda n: (0, 0)),    # resident across N
                pl.BlockSpec((K, tn), lambda n: (0, n)),   # streamed weight tile
                pl.BlockSpec((1, tn), lambda n: (0, n)),
            ],
            out_specs=pl.BlockSpec((M, tn), lambda n: (0, n)),
        ),
        compiler_params=pltpu.CompilerParams(
            dimension_semantics=("parallel",),
            vmem_limit_bytes=40 * 1024 * 1024),
    )(x2d, w_t, b.reshape(1, N))


# ==================================== GRU ======================================
# The input projection (x_t @ W_ih.T + b_ih) is h-independent and is computed
# with the tiled linear kernel above for all timesteps at once.  This kernel
# does only the sequential recurrence: grid = (T,); at t == 0 the full (H, 3H)
# recurrent weight is DMA'd from HBM into a single VMEM scratch buffer and
# stays resident for every timestep, so W_hh is streamed from HBM exactly once.
def _gru_kernel(xg_ref, whh_hbm, bhh_ref, h0_ref, out_ref,
                whh_vmem, h_scr, dma_sem, *, hidden):
    t = pl.program_id(0)

    @pl.when(t == 0)
    def _():
        cp = pltpu.make_async_copy(whh_hbm, whh_vmem, dma_sem)
        cp.start()
        cp.wait()
        h_scr[...] = h0_ref[...]

    H = hidden
    # recurrent contribution for all 3 gates in one MXU pass
    gh = jnp.dot(h_scr[...], whh_vmem[...],
                 preferred_element_type=jnp.float32) + bhh_ref[...]
    gi = xg_ref[0]                                   # (B, 3H) = x_t @ W_ih.T + b_ih
    r = jax.nn.sigmoid(gi[:, 0:H] + gh[:, 0:H])
    z = jax.nn.sigmoid(gi[:, H:2 * H] + gh[:, H:2 * H])
    # PyTorch GRU: n = tanh(gi_n + r * (W_hn h + b_hn))  (b_hn inside the r mult)
    c = jnp.tanh(gi[:, 2 * H:3 * H] + r * gh[:, 2 * H:3 * H])
    h_new = (1.0 - z) * c + z * h_scr[...]
    h_scr[...] = h_new
    out_ref[0] = h_new


def gru_pallas(x_gates_tbg, whh_t, b_hh, h0):
    """x_gates_tbg: (T, B, 3H), whh_t: (H, 3H), b_hh: (3H,), h0: (B, H) -> (T, B, H)."""
    T, B, G = x_gates_tbg.shape
    H = G // 3
    kernel = functools.partial(_gru_kernel, hidden=H)
    return pl.pallas_call(
        kernel,
        out_shape=jax.ShapeDtypeStruct((T, B, H), jnp.float32),
        grid_spec=pltpu.PrefetchScalarGridSpec(
            num_scalar_prefetch=0,
            grid=(T,),
            in_specs=[
                pl.BlockSpec((1, B, G), lambda t: (t, 0, 0)),   # x gate pre-acts
                pl.BlockSpec(memory_space=pl.ANY),              # W_hh.T stays in HBM
                pl.BlockSpec((1, G), lambda t: (0, 0)),         # b_hh (all gates)
                pl.BlockSpec((B, H), lambda t: (0, 0)),         # h0
            ],
            out_specs=pl.BlockSpec((1, B, H), lambda t: (t, 0, 0)),
            scratch_shapes=[
                pltpu.VMEM((H, G), jnp.float32),                # resident W_hh.T (48 MiB)
                pltpu.VMEM((B, H), jnp.float32),                # carried hidden state
                pltpu.SemaphoreType.DMA(()),
            ],
        ),
        compiler_params=pltpu.CompilerParams(
            dimension_semantics=("arbitrary",),                 # sequential recurrence
            vmem_limit_bytes=56 * 1024 * 1024),
    )(x_gates_tbg, whh_t, b_hh.reshape(1, G), h0)


# ======================= per-batch task-selected heads =========================
# Output dim padded to 128 lanes inside the kernel (unmasked lane-dense stores);
# the wrapper slices back to the real P (=3).
def _head_kernel(s_ref, w_ref, b_ref, o_ref):
    o_ref[0] = (jnp.dot(s_ref[0], w_ref[0], preferred_element_type=jnp.float32)
                + b_ref[0])


def heads_pallas(out_s, w_sel, b_sel):
    """out_s: (B, T, D), w_sel: (B, D, P), b_sel: (B, 1, P) -> (B, T, P)."""
    B, T, D = out_s.shape
    P = w_sel.shape[-1]
    w_pad = jnp.pad(w_sel, ((0, 0), (0, 0), (0, HEAD_PAD - P)))
    b_pad = jnp.pad(b_sel, ((0, 0), (0, 0), (0, HEAD_PAD - P)))
    out = pl.pallas_call(
        _head_kernel,
        out_shape=jax.ShapeDtypeStruct((B, T, HEAD_PAD), jnp.float32),
        grid_spec=pltpu.PrefetchScalarGridSpec(
            num_scalar_prefetch=0,
            grid=(B,),
            in_specs=[
                pl.BlockSpec((1, T, D), lambda b: (b, 0, 0)),
                pl.BlockSpec((1, D, HEAD_PAD), lambda b: (b, 0, 0)),
                pl.BlockSpec((1, 1, HEAD_PAD), lambda b: (b, 0, 0)),
            ],
            out_specs=pl.BlockSpec((1, T, HEAD_PAD), lambda b: (b, 0, 0)),
        ),
        compiler_params=pltpu.CompilerParams(
            dimension_semantics=("parallel",)),
    )(out_s, w_pad, b_pad)
    return out[:, :, :P]


# ================================ full forward =================================
def multihead_net_forward(params, x, task_label):
    B, T, D = x.shape
    x2 = x.reshape(B * T, D)
    h1 = linear_pallas(x2, params["w1_t"], params["b1"], relu=True)          # (BT, 1024)
    h2 = linear_pallas(h1, params["w2_t"], params["b2"], relu=True)          # (BT, 2048)

    # GRU input projections for all time steps (h-independent), then recurrence.
    xg = linear_pallas(h2, params["wih_t"], params["b_ih"], relu=False)      # (BT, 3H)
    xg = xg.reshape(B, T, 3 * MEMORY).transpose(1, 0, 2)                     # (T, B, 3H)
    h0 = jnp.zeros((B, MEMORY), jnp.float32)
    h_seq = gru_pallas(xg, params["whh_t"], params["b_hh"], h0)              # (T, B, H)
    out = h_seq.transpose(1, 0, 2)                                           # (B, T, H)
    h_next = h_seq[-1][None]                                                 # (1, B, H)

    out_s = linear_pallas(out.reshape(B * T, MEMORY), params["w3_t"],
                          params["b3"], relu=True).reshape(B, T, PENUL)

    labels = task_label[:, 0]                                                # (B,)
    # gather per-batch task-specific head weights (tiny glue), then batched matmul kernel
    w_sel = jnp.transpose(params["w_primary"][:, labels, :], (1, 2, 0))      # (B, D, P)
    b_sel = params["b_primary"][:, labels].T[:, None, :]                     # (B, 1, P)
    out_primary = heads_pallas(out_s, w_sel, b_sel)                          # (B, T, P)

    # TODO(synk): aux-head branch is dead for the default n_aux=0 (and the PyTorch
    # loop indexes out_aux with a stale variable); return the empty zeros tensor.
    n_aux = params["w_aux"].shape[0]
    out_aux = jnp.zeros((n_aux, B, T, 1), jnp.float32)
    return out_primary, out_aux, h_next


# ============================ params / reference ===============================
def init_params(key, input_size, n_tasks, n_primary, n_aux):
    def uniform(k, shape, fan_in):
        bound = 1.0 / np.sqrt(fan_in)
        return jax.random.uniform(k, shape, jnp.float32, -bound, bound)

    ks = jax.random.split(key, 14)
    H = MEMORY
    return dict(
        w1_t=uniform(ks[0], (input_size, PENUL), input_size),
        b1=uniform(ks[1], (PENUL,), input_size),
        w2_t=uniform(ks[2], (PENUL, H), PENUL),
        b2=uniform(ks[3], (H,), PENUL),
        wih_t=uniform(ks[4], (H, 3 * H), H),      # GRU W_ih.T, gate order r,z,n
        b_ih=uniform(ks[5], (3 * H,), H),
        whh_t=uniform(ks[6], (H, 3 * H), H),      # GRU W_hh.T
        b_hh=uniform(ks[7], (3 * H,), H),
        w3_t=uniform(ks[8], (H, PENUL), H),
        b3=uniform(ks[9], (PENUL,), H),
        w_primary=uniform(ks[10], (n_primary, n_tasks, PENUL), PENUL),
        b_primary=uniform(ks[11], (n_primary, n_tasks), PENUL),
        w_aux=uniform(ks[12], (n_aux, n_tasks, PENUL), PENUL),
        b_aux=uniform(ks[13], (n_aux, n_tasks), PENUL),
    )


def reference_forward(params, x, task_label):
    B, T, _ = x.shape
    H = MEMORY
    h1 = jax.nn.relu(x @ params["w1_t"] + params["b1"])
    h2 = jax.nn.relu(h1 @ params["w2_t"] + params["b2"])

    def step(h, xt):
        gi = xt @ params["wih_t"] + params["b_ih"]
        gh = h @ params["whh_t"] + params["b_hh"]
        r = jax.nn.sigmoid(gi[:, :H] + gh[:, :H])
        z = jax.nn.sigmoid(gi[:, H:2 * H] + gh[:, H:2 * H])
        c = jnp.tanh(gi[:, 2 * H:] + r * gh[:, 2 * H:])
        h_new = (1.0 - z) * c + z * h
        return h_new, h_new

    h0 = jnp.zeros((B, H), jnp.float32)
    h_last, hs = lax.scan(step, h0, jnp.transpose(h2, (1, 0, 2)))
    out = jnp.transpose(hs, (1, 0, 2))
    out_s = jax.nn.relu(out @ params["w3_t"] + params["b3"])
    labels = task_label[:, 0]
    w_sel = jnp.transpose(params["w_primary"][:, labels, :], (1, 2, 0))
    b_sel = params["b_primary"][:, labels].T
    out_primary = jnp.einsum("btd,bdp->btp", out_s, w_sel) + b_sel[:, None, :]
    return out_primary, h_last[None]


if __name__ == "__main__":
    B, T, INPUT_SIZE = 2, 8, 32
    N_TASKS, N_PRIMARY, N_AUX = 2, 3, 0

    key = jax.random.PRNGKey(0)
    kp, kx = jax.random.split(key)
    params = init_params(kp, INPUT_SIZE, N_TASKS, N_PRIMARY, N_AUX)
    x = jax.random.normal(kx, (B, T, INPUT_SIZE), jnp.float32)
    task_label = jnp.array([[0], [1]], dtype=jnp.int32)

    out_primary, out_aux, h_next = multihead_net_forward(params, x, task_label)
    jax.block_until_ready((out_primary, out_aux, h_next))

    ref_primary, ref_h = reference_forward(params, x, task_label)
    np.testing.assert_allclose(np.asarray(out_primary), np.asarray(ref_primary),
                               rtol=5e-3, atol=5e-3)
    np.testing.assert_allclose(np.asarray(h_next), np.asarray(ref_h),
                               rtol=5e-3, atol=5e-3)
    assert out_primary.shape == (B, T, N_PRIMARY)
    assert out_aux.shape == (N_AUX, B, T, 1)
    assert h_next.shape == (1, B, MEMORY)
    print("KERNEL_OK")
</pallas_src>

<mosaic_0001>
module attributes {stable_mosaic.version = 11 : i64} {
  func.func @_linear_kernel(%arg0: i32, %arg1: memref<16x32xf32, #tpu.memory_space<vmem>>, %arg2: memref<32x512xf32, #tpu.memory_space<vmem>>, %arg3: memref<1x512xf32, #tpu.memory_space<vmem>>, %arg4: memref<16x512xf32, #tpu.memory_space<vmem>>) attributes {dimension_semantics = [#tpu.dimension_semantics<parallel>], iteration_bounds = array<i64: 2>, scalar_prefetch = 0 : i64, scratch_operands = 0 : i64, tpu.core_type = #tpu.core_type<tc>, window_params = [{pipeline_mode = #tpu.pipeline_mode<synchronous>, transform_indices = @transform_0, window_bounds = array<i64: 16, 32>}, {transform_indices = @transform_1, window_bounds = array<i64: 32, 512>}, {transform_indices = @transform_2, window_bounds = array<i64: 1, 512>}, {transform_indices = @transform_3, window_bounds = array<i64: 16, 512>}]} {
    %c0 = arith.constant 0 : index
    %c0_0 = arith.constant 0 : index
    %0 = vector.load %arg1[%c0, %c0_0] : memref<16x32xf32, #tpu.memory_space<vmem>>, vector<16x32xf32>
    %c0_1 = arith.constant 0 : index
    %c0_2 = arith.constant 0 : index
    %1 = vector.load %arg2[%c0_1, %c0_2] : memref<32x512xf32, #tpu.memory_space<vmem>>, vector<32x512xf32>
    %cst = arith.constant dense<0.000000e+00> : vector<16x512xf32>
    %2 = tpu.matmul %0, %1, %cst {dimension_numbers = #tpu.dot_dimension_numbers<[1], [0], [0], [1], [0, 0, 1, 1], [], []>} : vector<16x32xf32>, vector<32x512xf32>, vector<16x512xf32> -> vector<16x512xf32>
    %c0_3 = arith.constant 0 : index
    %c0_4 = arith.constant 0 : index
    %3 = vector.load %arg3[%c0_3, %c0_4] : memref<1x512xf32, #tpu.memory_space<vmem>>, vector<1x512xf32>
    %4 = vector.broadcast %3 : vector<1x512xf32> to vector<16x512xf32>
    %5 = arith.addf %2, %4 : vector<16x512xf32>
    %cst_5 = arith.constant 0.000000e+00 : f32
    %6 = vector.broadcast %cst_5 : f32 to vector<16x512xf32>
    %7 = arith.maximumf %5, %6 : vector<16x512xf32>
    %c0_6 = arith.constant 0 : index
    %c0_7 = arith.constant 0 : index
    %8 = vector.load %arg4[%c0_6, %c0_7] : memref<16x512xf32, #tpu.memory_space<vmem>>, vector<16x512xf32>
    tpu.vector_store %arg4[%c0_6, %c0_7], %7 {strides = array<i32>} : memref<16x512xf32, #tpu.memory_space<vmem>>, vector<16x512xf32>,
    return
  }
  func.func @transform_0(%arg0: i32) -> (i32, i32) {
    %c0_i32 = arith.constant 0 : i32
    %c0_i32_0 = arith.constant 0 : i32
    %c0_i32_1 = arith.constant 0 : i32
    return %c0_i32, %c0_i32_0 : i32, i32
  }
  func.func @transform_1(%arg0: i32) -> (i32, i32) {
    %c0_i32 = arith.constant 0 : i32
    %c0_i32_0 = arith.constant 0 : i32
    return %c0_i32, %arg0 : i32, i32
  }
  func.func @transform_2(%arg0: i32) -> (i32, i32) {
    %c0_i32 = arith.constant 0 : i32
    %c0_i32_0 = arith.constant 0 : i32
    return %c0_i32, %arg0 : i32, i32
  }
  func.func @transform_3(%arg0: i32) -> (i32, i32) {
    %c0_i32 = arith.constant 0 : i32
    %c0_i32_0 = arith.constant 0 : i32
    return %c0_i32, %arg0 : i32, i32
  }
}

</mosaic_0001>

<llo_original>
// kernel: tpu_custom_call.1
$region0: #{tpu_custom_call.1}
  #allocation0 [shape = 'u32[]', space=smem, size = 0x4, offset = 0x4, fixed_abs, tag = 'smem constant byte address 0x4 - core index']
  #allocation1 [shape = 'u32[144,128]{1,0:T(1,128)}', space=vmem, size = 0x12000, scoped, tag = 'internal scratch']
  %s0 = inlined_call_operand.hbm [shape: f32[16,32], index: 0, kind: input, shape index: {}]
  %s1 = inlined_call_operand.hbm [shape: f32[32,1024], index: 1, kind: input, shape index: {}]
  %s2 = inlined_call_operand.hbm [shape: f32[1,1024], index: 2, kind: input, shape index: {}]
  %s3 = inlined_call_operand.hbm [shape: f32[16,1024], index: 3, kind: output, shape index: {}]
  %s4 = sld [smem:[#allocation0]]
  $region57: #{tpu_custom_call.1} parent=0
    _
  %s6 = ssub.s32 1, %s4
  %s7 = scalar_select 0, %s6, %s4
  $region1: #{tpu_custom_call.1} parent=0
    #allocation2 [shape = 'u8[8192]{0}', space=vmem, size = 0x2000, scoped, tag = 'input window, operand 0, single buffered']
    #allocation3 [shape = 's32[2]{0}', space=sflag, size = 0x8, scoped, tag = 'scoped memory for tpu_custom_call.1']
    #allocation4 [shape = 's32[2]{0}', space=sflag, size = 0x8, scoped, tag = 'scoped memory for tpu_custom_call.1']
    #allocation5 [shape = 'u8[131072]{0}', space=vmem, size = 0x20000, scoped, tag = 'input window, operand 1']
    #allocation6 [shape = 's32[2]{0}', space=sflag, size = 0x8, scoped, tag = 'scoped memory for tpu_custom_call.1']
    #allocation7 [shape = 'u8[4096]{0}', space=vmem, size = 0x1000, scoped, tag = 'input window, operand 2']
    #allocation8 [shape = 'u8[65536]{0}', space=vmem, size = 0x10000, scoped, tag = 'output window, operand 0']
    %8 = vsyncpa [#allocation3], 0
    %9 = vsyncpa [#allocation6], 0
    %s10 = scalar_lea.sflag [#allocation6], 1
    %11 = vsyncpa %s10, 0
    %12 = vsyncpa [#allocation4], 0
    %s13 = scalar_lea.sflag [#allocation4], 1
    %14 = vsyncpa %s13, 0
    loop: start=0, step=1, limit=4
    $region2: #{tpu_custom_call.1} parent=1 // loop_pre_header
      _
    $region3: #{tpu_custom_call.1} parent=1 // loop_header
      %s16 = sphi 0, %s20
      %p17 = scmp.ge.s32.totalorder %s16, 4
      %s24 = sphi 0, %s24
      %s26 = sphi 0, %s24
      %s27 = sphi 0, %s26
      %s41 = sphi 0, %s27
      %s47 = sphi 0, %s49
      %s50 = sphi 0, %s47
      %s51 = sphi 0, %s50
      %s67 = sphi 0, %s51
      %s73 = sphi 0, %s75
      %s76 = sphi 0, %s73
      %s77 = sphi 0, %s76
      %s93 = sphi 0, %s77
      %s99 = sphi 0, %s101
      %s102 = sphi 0, %s99
      %s103 = sphi 0, %s102
      %s119 = sphi 0, %s103
    $region4: #{tpu_custom_call.1} parent=1 // loop_header_branch
      %19 = sbr.rel (%p17) target = $region8
    $region5: #{tpu_custom_call.1} parent=1 // loop_body
      %s21 = ssub.s32 %s16, 1
      %s22 = ssub.s32 %s16, 2
      %s23 = sadd.s32 %s16, 1
      %s25 = sadd.s32 %s24, 1
      %p28 = scmp.eq.s32.totalorder %s16, 1
      %p29 = scmp.ne.s32.totalorder %s24, %s26
      %p30 = scmp.eq.s32.totalorder %s16, 0
      %p31 = por %p29, %p30
      %p32 = scmp.ne.s32.totalorder %s24, %s26
      %p33 = scmp.eq.s32.totalorder %s21, 1
      %p34 = por %p32, %p33
      %p35 = scmp.ne.s32.totalorder %s26, %s27
      %p36 = scmp.eq.s32.totalorder %s21, 0
      %p37 = por %p35, %p36
      %p38 = scmp.ne.s32.totalorder %s26, %s27
      %p39 = scmp.eq.s32.totalorder %s22, 1
      %p40 = por %p38, %p39
      %p42 = scmp.ne.s32.totalorder %s27, %s41
      %p43 = scmp.eq.s32.totalorder %s22, 0
      %p44 = por %p42, %p43
      %s45 = ssub.s32 %s16, %s23
      %p46 = scmp.eq.s32.totalorder %s45, 0
      %s48 = sadd.s32 %s47, 1
      %s49 = scalar_select %p46, %s47, %s48
      %p52 = pneg %p46
      %p53 = scmp.eq.s32.totalorder %s16, 1
      %p54 = por %p52, %p53
      %p55 = scmp.ne.s32.totalorder %s47, %s50
      %p56 = scmp.eq.s32.totalorder %s16, 0
      %p57 = por %p55, %p56
      %p58 = scmp.ne.s32.totalorder %s47, %s50
      %p59 = scmp.eq.s32.totalorder %s21, 1
      %p60 = por %p58, %p59
      %p61 = scmp.ne.s32.totalorder %s50, %s51
      %p62 = scmp.eq.s32.totalorder %s21, 0
      %p63 = por %p61, %p62
      %p64 = scmp.ne.s32.totalorder %s50, %s51
      %p65 = scmp.eq.s32.totalorder %s22, 1
      %p66 = por %p64, %p65
      %p68 = scmp.ne.s32.totalorder %s51, %s67
      %p69 = scmp.eq.s32.totalorder %s22, 0
      %p70 = por %p68, %p69
      %s71 = ssub.s32 %s16, %s23
      %p72 = scmp.eq.s32.totalorder %s71, 0
      %s74 = sadd.s32 %s73, 1
      %s75 = scalar_select %p72, %s73, %s74
      %p78 = pneg %p72
      %p79 = scmp.eq.s32.totalorder %s16, 1
      %p80 = por %p78, %p79
      %p81 = scmp.ne.s32.totalorder %s73, %s76
      %p82 = scmp.eq.s32.totalorder %s16, 0
      %p83 = por %p81, %p82
      %p84 = scmp.ne.s32.totalorder %s73, %s76
      %p85 = scmp.eq.s32.totalorder %s21, 1
      %p86 = por %p84, %p85
      %p87 = scmp.ne.s32.totalorder %s76, %s77
      %p88 = scmp.eq.s32.totalorder %s21, 0
      %p89 = por %p87, %p88
      %p90 = scmp.ne.s32.totalorder %s76, %s77
      %p91 = scmp.eq.s32.totalorder %s22, 1
      %p92 = por %p90, %p91
      %p94 = scmp.ne.s32.totalorder %s77, %s93
      %p95 = scmp.eq.s32.totalorder %s22, 0
      %p96 = por %p94, %p95
      %s97 = ssub.s32 %s16, %s23
      %p98 = scmp.eq.s32.totalorder %s97, 0
      %s100 = sadd.s32 %s99, 1
      %s101 = scalar_select %p98, %s99, %s100
      %p104 = pneg %p98
      %p105 = scmp.eq.s32.totalorder %s16, 1
      %p106 = por %p104, %p105
      %p107 = scmp.ne.s32.totalorder %s99, %s102
      %p108 = scmp.eq.s32.totalorder %s16, 0
      %p109 = por %p107, %p108
      %p110 = scmp.ne.s32.totalorder %s99, %s102
      %p111 = scmp.eq.s32.totalorder %s21, 1
      %p112 = por %p110, %p111
      %p113 = scmp.ne.s32.totalorder %s102, %s103
      %p114 = scmp.eq.s32.totalorder %s21, 0
      %p115 = por %p113, %p114
      %p116 = scmp.ne.s32.totalorder %s102, %s103
      %p117 = scmp.eq.s32.totalorder %s22, 1
      %p118 = por %p116, %p117
      %p120 = scmp.ne.s32.totalorder %s103, %s119
      %p121 = scmp.eq.s32.totalorder %s22, 0
      %p122 = por %p120, %p121
      %p123 = scmp.le.s32.totalorder 1, %s16
      %p124 = scmp.lt.s32.totalorder %s16, 3
      %p125 = pnand %p123, %p124
      %p126 = pneg %p125
      // Predicated region
      $region9: #{tpu_custom_call.1} parent=5 // pred_check
        _
      $region10: #{tpu_custom_call.1} parent=5 // pred_check_branch
        %128 = sbr.rel (%p125) target = $region12
      $region11: #{tpu_custom_call.1} parent=5 // pred_region
        %s129 = ssub.s32 %s16, 1
        // Predicated region
        $region13: #{tpu_custom_call.1} parent=11 // pred_check
          %p130 = pneg %p37
        $region14: #{tpu_custom_call.1} parent=11 // pred_check_branch
          %132 = sbr.rel (%p130) target = $region16
        $region15: #{tpu_custom_call.1} parent=11 // pred_region
          %s134 = ssub.s32 256, 256
          %135 = vsyncadd [#allocation3], %s134
          %s136 = sshll.u32 [#allocation2], 4
          %s137 = int_to_ptr.vmem [resolvable:$true] %s136
          %142 = dma.hbm_to_vmem [thread:$0]  %s0, 256, %s137, [#allocation3], 128, 128, 8
        $region16: #{tpu_custom_call.1} parent=11 // pred_fallthru
          _
      $region12: #{tpu_custom_call.1} parent=5 // pred_fallthru
        _
      %p143 = scmp.lt.s32.totalorder %s16, 2
      // Predicated region
      $region17: #{tpu_custom_call.1} parent=5 // pred_check
        %p144 = pneg %p143
      $region18: #{tpu_custom_call.1} parent=5 // pred_check_branch
        %146 = sbr.rel (%p144) target = $region20
      $region19: #{tpu_custom_call.1} parent=5 // pred_region
        // Predicated region
        $region21: #{tpu_custom_call.1} parent=19 // pred_check
          %p147 = pneg %p57
        $region22: #{tpu_custom_call.1} parent=19 // pred_check_branch
          %149 = sbr.rel (%p147) target = $region24
        $region23: #{tpu_custom_call.1} parent=19 // pred_region
          %s150 = sand.u32 %s16, 1
          %s151 = scalar_lea.sflag [#allocation6], %s150
          %s152 = sand.u32 %s47, 1
          %s153 = smul.addr %s152, 128
          %s154 = scalar_lea.vmem [#allocation5], %s153
          %s155 = smul.u32 4, %s16
          %s157 = ssub.s32 2048, 2048
          %158 = vsyncadd %s151, %s157
          %s159 = smul.addr %s155, 128
          %s160 = scalar_lea.hbm %s1, %s159
          %s161 = sshll.u32 %s154, 4
          %s162 = int_to_ptr.vmem [resolvable:$true] %s161
          %167 = dma.hbm_to_vmem [thread:$0]  %s160, 2048, %s162, %s151, 1024, 512, 32
        $region24: #{tpu_custom_call.1} parent=19 // pred_fallthru
          _
        // Predicated region
        $region25: #{tpu_custom_call.1} parent=19 // pred_check
          %p168 = pneg %p83
        $region26: #{tpu_custom_call.1} parent=19 // pred_check_branch
          %170 = sbr.rel (%p168) target = $region28
        $region27: #{tpu_custom_call.1} parent=19 // pred_region
          %s171 = sand.u32 %s16, 1
          %s172 = scalar_lea.sflag [#allocation6], %s171
          %s173 = sand.u32 %s73, 1
          %s174 = smul.addr %s173, 4
          %s175 = scalar_lea.vmem [#allocation7], %s174
          %s176 = smul.u32 4, %s16
          %s178 = ssub.s32 64, 64
          %179 = vsyncadd %s172, %s178
          %s180 = smul.addr %s176, 16
          %s181 = scalar_lea.hbm %s2, %s180
          %s183 = sshll.u32 %s175, 4
          %s184 = int_to_ptr.vmem [resolvable:$true] %s183
          %186 = dma.hbm_to_vmem [thread:$0]  %s181, 64, %s184, %s172
        $region28: #{tpu_custom_call.1} parent=19 // pred_fallthru
          _
      $region20: #{tpu_custom_call.1} parent=5 // pred_fallthru
        _
      %p187 = scmp.le.s32.totalorder 1, %s16
      %p188 = scmp.lt.s32.totalorder %s16, 3
      %p189 = pnand %p187, %p188
      %p190 = pneg %p189
      // Predicated region
      $region29: #{tpu_custom_call.1} parent=5 // pred_check
        _
      $region30: #{tpu_custom_call.1} parent=5 // pred_check_branch
        %192 = sbr.rel (%p189) target = $region32
      $region31: #{tpu_custom_call.1} parent=5 // pred_region
        %s193 = ssub.s32 %s16, 1
        // Predicated region
        $region33: #{tpu_custom_call.1} parent=31 // pred_check
          %p194 = pneg %p37
        $region34: #{tpu_custom_call.1} parent=31 // pred_check_branch
          %196 = sbr.rel (%p194) target = $region36
        $region35: #{tpu_custom_call.1} parent=31 // pred_region
          %197 = dma.done [#allocation3], 256
        $region36: #{tpu_custom_call.1} parent=31 // pred_fallthru
          _
        %s198 = sand.u32 %s21, 1
        %s199 = scalar_lea.sflag [#allocation6], %s198
        %s200 = sand.u32 %s50, 1
        %s201 = smul.addr %s200, 128
        %s202 = scalar_lea.vmem [#allocation5], %s201
        // Predicated region
        $region37: #{tpu_custom_call.1} parent=31 // pred_check
          %p203 = pneg %p63
        $region38: #{tpu_custom_call.1} parent=31 // pred_check_branch
          %205 = sbr.rel (%p203) target = $region40
        $region39: #{tpu_custom_call.1} parent=31 // pred_region
          %206 = dma.done %s199, 2048
        $region40: #{tpu_custom_call.1} parent=31 // pred_fallthru
          _
        %s207 = sand.u32 %s21, 1
        %s208 = scalar_lea.sflag [#allocation6], %s207
        %s209 = sand.u32 %s76, 1
        %s210 = smul.addr %s209, 4
        %s211 = scalar_lea.vmem [#allocation7], %s210
        // Predicated region
        $region41: #{tpu_custom_call.1} parent=31 // pred_check
          %p212 = pneg %p89
        $region42: #{tpu_custom_call.1} parent=31 // pred_check_branch
          %214 = sbr.rel (%p212) target = $region44
        $region43: #{tpu_custom_call.1} parent=31 // pred_region
          %215 = dma.done %s208, 64
        $region44: #{tpu_custom_call.1} parent=31 // pred_fallthru
          _
        %p216 = pneg %p37
        %p217 = pneg %p34
        %s218 = sand.u32 %s21, 1
        %s219 = scalar_lea.sflag [#allocation6], %s218
        %s220 = sand.u32 %s50, 1
        %s221 = smul.addr %s220, 128
        %s222 = scalar_lea.vmem [#allocation5], %s221
        %p223 = pneg %p63
        %p224 = pneg %p60
        %s225 = sand.u32 %s21, 1
        %s226 = scalar_lea.sflag [#allocation6], %s225
        %s227 = sand.u32 %s76, 1
        %s228 = smul.addr %s227, 4
        %s229 = scalar_lea.vmem [#allocation7], %s228
        %p230 = pneg %p89
        %p231 = pneg %p86
        %p232 = pneg %p115
        %p233 = pneg %p112
        %s234 = sand.u32 %s102, 1
        %s235 = scalar_lea.sflag [#allocation4], %s234
        %s236 = sand.u32 %s102, 1
        %s237 = smul.addr %s236, 64
        %s238 = scalar_lea.vmem [#allocation8], %s237
        %s239 = smul.u32 4, %s21
        %s240 = smul.u32 4, %s21
        %s241 = smul.u32 4, %s21
        %v242 = vld [vmem:[#allocation2] sm:$0xff]
        %v243 = vld [vmem:[#allocation2 + $0x8] sm:$0xff]
        %v244 = vld [vmem:[%s202] sm:$0xff]
        %v245 = vld [vmem:[%s202 + $0x8] sm:$0xff]
        %v246 = vld [vmem:[%s202 + $0x10] sm:$0xff]
        %v247 = vld [vmem:[%s202 + $0x18] sm:$0xff]
        %v248 = vld [vmem:[%s202 + $0x20] sm:$0xff]
        %v249 = vld [vmem:[%s202 + $0x28] sm:$0xff]
        %v250 = vld [vmem:[%s202 + $0x30] sm:$0xff]
        %v251 = vld [vmem:[%s202 + $0x38] sm:$0xff]
        %v252 = vld [vmem:[%s202 + $0x40] sm:$0xff]
        %v253 = vld [vmem:[%s202 + $0x48] sm:$0xff]
        %v254 = vld [vmem:[%s202 + $0x50] sm:$0xff]
        %v255 = vld [vmem:[%s202 + $0x58] sm:$0xff]
        %v256 = vld [vmem:[%s202 + $0x60] sm:$0xff]
        %v257 = vld [vmem:[%s202 + $0x68] sm:$0xff]
        %v258 = vld [vmem:[%s202 + $0x70] sm:$0xff]
        %v259 = vld [vmem:[%s202 + $0x78] sm:$0xff]
        %v260 = vld [vmem:[%s211] sm:$0xf]
        %v262 = vlaneseq
        %v263 = vshrl.u32 %v262, 7
        %v264 = vsub.s32 0, %v263
        %v265 = vrot.slane %v260, %v264
        %v266 = vlaneseq
        %v267 = vshrl.u32 %v266, 7
        %v268 = vsub.s32 1, %v267
        %v269 = vrot.slane %v260, %v268
        %v270 = vlaneseq
        %v271 = vshrl.u32 %v270, 7
        %v272 = vsub.s32 2, %v271
        %v273 = vrot.slane %v260, %v272
        %v274 = vlaneseq
        %v275 = vshrl.u32 %v274, 7
        %v276 = vsub.s32 3, %v275
        %v277 = vrot.slane %v260, %v276
        %vm282 = vcmask 261120
        %v284 = vsel %vm282, %v242, 0
        %v287 = vsel %vm282, %v243, 0
        %289 = vmatprep.subr.mxu0 0.0
        %290 = vmatpush1.msra.mxu0 0.0
        %291 = vmatprep.subr.mxu0 0.0
        %292 = vmatpush1.msra.mxu0 0.0
        %293 = vmatprep.subr.mxu0 0.0
        %294 = vmatpush1.msra.mxu0 0.0
        %295 = vmatprep.subr.mxu0 0.0
        %296 = vmatpush1.msra.mxu0 0.0
        %297 = vmatprep.subr.mxu0 0.0
        %298 = vmatpush1.msra.mxu0 0.0
        %299 = vmatprep.subr.mxu0 0.0
        %300 = vmatpush1.msra.mxu0 0.0
        %301 = vmatprep.subr.mxu0 0.0
        %302 = vmatpush1.msra.mxu0 0.0
        %303 = vmatprep.subr.mxu0 0.0
        %304 = vmatpush1.msra.mxu0 0.0
        %305 = vmatprep.subr.mxu0 0.0
        %306 = vmatpush1.msra.mxu0 0.0
        %307 = vmatprep.subr.mxu0 0.0
        %308 = vmatpush1.msra.mxu0 0.0
        %309 = vmatprep.subr.mxu0 0.0
        %310 = vmatpush1.msra.mxu0 0.0
        %311 = vmatprep.subr.mxu0 0.0
        %312 = vmatpush1.msra.mxu0 0.0
        %313 = vmatprep.subr.mxu0 %v257
        %314 = vmatpush1.msra.mxu0 %v256
        %315 = vmatprep.subr.mxu0 %v253
        %316 = vmatpush1.msra.mxu0 %v252
        %317 = vmatprep.subr.mxu0 %v249
        %318 = vmatpush1.msra.mxu0 %v248
        %319 = vmatprep.subr.mxu0 %v245
        %320 = vmatpush1.msra.mxu0 %v244
        %321 = vmatprep.subr.mxu0 0.0
        %322 = vmatpush2.msra.mxu0 0.0
        %323 = vmatprep.subr.mxu0 0.0
        %324 = vmatpush2.msra.mxu0 0.0
        %325 = vmatprep.subr.mxu0 0.0
        %326 = vmatpush2.msra.mxu0 0.0
        %327 = vmatprep.subr.mxu0 0.0
        %328 = vmatpush2.msra.mxu0 0.0
        %329 = vmatprep.subr.mxu0 0.0
        %330 = vmatpush2.msra.mxu0 0.0
        %331 = vmatprep.subr.mxu0 0.0
        %332 = vmatpush2.msra.mxu0 0.0
        %333 = vmatprep.subr.mxu0 0.0
        %334 = vmatpush2.msra.mxu0 0.0
        %335 = vmatprep.subr.mxu0 0.0
        %336 = vmatpush2.msra.mxu0 0.0
        %337 = vmatprep.subr.mxu0 0.0
        %338 = vmatpush2.msra.mxu0 0.0
        %339 = vmatprep.subr.mxu0 0.0
        %340 = vmatpush2.msra.mxu0 0.0
        %341 = vmatprep.subr.mxu0 0.0
        %342 = vmatpush2.msra.mxu0 0.0
        %343 = vmatprep.subr.mxu0 0.0
        %344 = vmatpush2.msra.mxu0 0.0
        %345 = vmatprep.subr.mxu0 0.0
        %346 = vmatpush2.msra.mxu0 0.0
        %347 = vmatprep.subr.mxu0 0.0
        %348 = vmatpush2.msra.mxu0 0.0
        %349 = vmatprep.subr.mxu0 0.0
        %350 = vmatpush2.msra.mxu0 0.0
        %351 = vmatprep.subr.mxu0 0.0
        %352 = vmatpush2.msra.mxu0 0.0
        %353 = vmatprep.mubr.f32.mxu0 0.0
        %354 = vmatmul.mubr.f32.gmra.mxu0 %v284
        %v355 = vpop.f32.mrf.mxu0
        %v356 = vadd.f32 %v265, %v355
        %v357 = vpop.f32.mrf.mxu0
        %v358 = vadd.f32 %v269, %v357
        %359 = vmatprep.mubr.f32.mxu0 0.0
        %360 = vmatmul.mubr.f32.gmra.mxu0 %v287
        %v361 = vpop.f32.mrf.mxu0
        %v362 = vadd.f32 %v265, %v361
        %v363 = vpop.f32.mrf.mxu0
        %v364 = vadd.f32 %v269, %v363
        %365 = vdwg.mxu0
        %366 = vmatprep.subr.mxu0 0.0
        %367 = vmatpush1.msra.mxu0 0.0
        %368 = vmatprep.subr.mxu0 0.0
        %369 = vmatpush1.msra.mxu0 0.0
        %370 = vmatprep.subr.mxu0 0.0
        %371 = vmatpush1.msra.mxu0 0.0
        %372 = vmatprep.subr.mxu0 0.0
        %373 = vmatpush1.msra.mxu0 0.0
        %374 = vmatprep.subr.mxu0 0.0
        %375 = vmatpush1.msra.mxu0 0.0
        %376 = vmatprep.subr.mxu0 0.0
        %377 = vmatpush1.msra.mxu0 0.0
        %378 = vmatprep.subr.mxu0 0.0
        %379 = vmatpush1.msra.mxu0 0.0
        %380 = vmatprep.subr.mxu0 0.0
        %381 = vmatpush1.msra.mxu0 0.0
        %382 = vmatprep.subr.mxu0 0.0
        %383 = vmatpush1.msra.mxu0 0.0
        %384 = vmatprep.subr.mxu0 0.0
        %385 = vmatpush1.msra.mxu0 0.0
        %386 = vmatprep.subr.mxu0 0.0
        %387 = vmatpush1.msra.mxu0 0.0
        %388 = vmatprep.subr.mxu0 0.0
        %389 = vmatpush1.msra.mxu0 0.0
        %390 = vmatprep.subr.mxu0 %v259
        %391 = vmatpush1.msra.mxu0 %v258
        %392 = vmatprep.subr.mxu0 %v255
        %393 = vmatpush1.msra.mxu0 %v254
        %394 = vmatprep.subr.mxu0 %v251
        %395 = vmatpush1.msra.mxu0 %v250
        %396 = vmatprep.subr.mxu0 %v247
        %397 = vmatpush1.msra.mxu0 %v246
        %398 = vmatprep.subr.mxu0 0.0
        %399 = vmatpush2.msra.mxu0 0.0
        %400 = vmatprep.subr.mxu0 0.0
        %401 = vmatpush2.msra.mxu0 0.0
        %402 = vmatprep.subr.mxu0 0.0
        %403 = vmatpush2.msra.mxu0 0.0
        %404 = vmatprep.subr.mxu0 0.0
        %405 = vmatpush2.msra.mxu0 0.0
        %406 = vmatprep.subr.mxu0 0.0
        %407 = vmatpush2.msra.mxu0 0.0
        %408 = vmatprep.subr.mxu0 0.0
        %409 = vmatpush2.msra.mxu0 0.0
        %410 = vmatprep.subr.mxu0 0.0
        %411 = vmatpush2.msra.mxu0 0.0
        %412 = vmatprep.subr.mxu0 0.0
        %413 = vmatpush2.msra.mxu0 0.0
        %414 = vmatprep.subr.mxu0 0.0
        %415 = vmatpush2.msra.mxu0 0.0
        %416 = vmatprep.subr.mxu0 0.0
        %417 = vmatpush2.msra.mxu0 0.0
        %418 = vmatprep.subr.mxu0 0.0
        %419 = vmatpush2.msra.mxu0 0.0
        %420 = vmatprep.subr.mxu0 0.0
        %421 = vmatpush2.msra.mxu0 0.0
        %422 = vmatprep.subr.mxu0 0.0
        %423 = vmatpush2.msra.mxu0 0.0
        %424 = vmatprep.subr.mxu0 0.0
        %425 = vmatpush2.msra.mxu0 0.0
        %426 = vmatprep.subr.mxu0 0.0
        %427 = vmatpush2.msra.mxu0 0.0
        %428 = vmatprep.subr.mxu0 0.0
        %429 = vmatpush2.msra.mxu0 0.0
        %430 = vmatprep.mubr.f32.mxu0 0.0
        %431 = vmatmul.mubr.f32.gmra.mxu0 %v284
        %v432 = vpop.f32.mrf.mxu0
        %v433 = vadd.f32 %v273, %v432
        %v434 = vpop.f32.mrf.mxu0
        %v435 = vadd.f32 %v277, %v434
        %436 = vmatprep.mubr.f32.mxu0 0.0
        %437 = vmatmul.mubr.f32.gmra.mxu0 %v287
        %v438 = vpop.f32.mrf.mxu0
        %v439 = vadd.f32 %v273, %v438
        %v440 = vpop.f32.mrf.mxu0
        %v441 = vadd.f32 %v277, %v440
        %442 = vdwg.mxu0
        %v443 = vmax.f32 %v356, 0.0
        %v444 = vmax.f32 %v358, 0.0
        %v445 = vmax.f32 %v433, 0.0
        %v446 = vmax.f32 %v435, 0.0
        %v447 = vmax.f32 %v362, 0.0
        %v448 = vmax.f32 %v364, 0.0
        %v449 = vmax.f32 %v439, 0.0
        %v450 = vmax.f32 %v441, 0.0
        %451 = vst [vmem:[%s238] sm:$0xff] %v443
        %452 = vst [vmem:[%s238 + $0x8] sm:$0xff] %v444
        %453 = vst [vmem:[%s238 + $0x10] sm:$0xff] %v445
        %454 = vst [vmem:[%s238 + $0x18] sm:$0xff] %v446
        %455 = vst [vmem:[%s238 + $0x20] sm:$0xff] %v447
        %456 = vst [vmem:[%s238 + $0x28] sm:$0xff] %v448
        %457 = vst [vmem:[%s238 + $0x30] sm:$0xff] %v449
        %458 = vst [vmem:[%s238 + $0x38] sm:$0xff] %v450
        %s459 = sand.u32 %s102, 1
        %s460 = scalar_lea.sflag [#allocation4], %s459
        %s461 = sand.u32 %s102, 1
        %s462 = smul.addr %s461, 64
        %s463 = scalar_lea.vmem [#allocation8], %s462
        // Predicated region
        $region45: #{tpu_custom_call.1} parent=31 // pred_check
          %p464 = pneg %p112
        $region46: #{tpu_custom_call.1} parent=31 // pred_check_branch
          %466 = sbr.rel (%p464) target = $region48
        $region47: #{tpu_custom_call.1} parent=31 // pred_region
          %s467 = smul.u32 4, %s21
          %s469 = ssub.s32 1024, 1024
          %470 = vsyncadd %s460, %s469
          %s471 = smul.addr %s467, 128
          %s472 = scalar_lea.hbm %s3, %s471
          %s473 = sshll.u32 %s463, 4
          %s474 = int_to_ptr.vmem [resolvable:$true] %s473
          %479 = dma.vmem_to_hbm [thread:$0]  %s474, 1024, %s472, %s460, 512, 1024, 32
        $region48: #{tpu_custom_call.1} parent=31 // pred_fallthru
          _
      $region32: #{tpu_custom_call.1} parent=5 // pred_fallthru
        _
      %p480 = scmp.le.s32.totalorder 2, %s16
      // Predicated region
      $region49: #{tpu_custom_call.1} parent=5 // pred_check
        %p481 = pneg %p480
      $region50: #{tpu_custom_call.1} parent=5 // pred_check_branch
        %483 = sbr.rel (%p481) target = $region52
      $region51: #{tpu_custom_call.1} parent=5 // pred_region
        %s484 = ssub.s32 %s16, 2
        // Predicated region
        $region53: #{tpu_custom_call.1} parent=51 // pred_check
          %p485 = pneg %p118
        $region54: #{tpu_custom_call.1} parent=51 // pred_check_branch
          %487 = sbr.rel (%p485) target = $region56
        $region55: #{tpu_custom_call.1} parent=51 // pred_region
          %s488 = sand.u32 %s103, 1
          %s489 = scalar_lea.sflag [#allocation4], %s488
          %s490 = sand.u32 %s103, 1
          %s491 = smul.addr %s490, 64
          %s492 = scalar_lea.vmem [#allocation8], %s491
          %493 = dma.done %s489, 1024
        $region56: #{tpu_custom_call.1} parent=51 // pred_fallthru
          _
      $region52: #{tpu_custom_call.1} parent=5 // pred_fallthru
        _
    $region6: #{tpu_custom_call.1} parent=1 // loop_footer
      %s20 = sadd.s32 1, %s16
    $region7: #{tpu_custom_call.1} parent=1 // loop_footer_branch
      %15 = sbr.rel target = $region3
    $region8: #{tpu_custom_call.1} parent=1 // loop_exit
      _
    %494 = vsyncpa [#allocation3], 1
    %s495 = scalar_lea.sflag [#allocation3], 1
    %496 = vsyncpa %s495, 1
    %497 = vsyncpa [#allocation6], 1
    %s498 = scalar_lea.sflag [#allocation6], 1
    %499 = vsyncpa %s498, 1
    %500 = vsyncpa [#allocation4], 1
    %s501 = scalar_lea.sflag [#allocation4], 1
    %502 = vsyncpa %s501, 1

</llo_original>
